<compile_context>
chip_gen: v7x
topology: tpu7x:2x2x1
jax: 0.10.0
libtpu: 0.0.40
codegen_flags: <defaults>
</compile_context>

<pallas_src>
import functools

import jax
import jax.numpy as jnp
from jax import lax
from jax.experimental import pallas as pl
from jax.experimental.pallas import tpu as pltpu


def _round_up(x: int, m: int) -> int:
    return ((x + m - 1) // m) * m


def _vmem_cap_bytes() -> int:
    """Physical VMEM of the current chip; conservative fallback if unavailable."""
    try:
        return int(pltpu.get_tpu_info().vmem_capacity_bytes)
    except Exception:
        return 64 * 1024 * 1024  # v7x per-TensorCore VMEM (smallest current part)


def _linear_classifier_kernel(x_ref, w_ref, b_ref, o_ref):
    # x_ref: (TM, C) input dtype (f32/bf16), w_ref: (L_pad, C) bf16,
    # b_ref: (L_pad, 1) f32, o_ref: (L_pad, TM) f32.
    x = x_ref[...].astype(jnp.bfloat16)        # cast fused in-kernel (no HBM pass)
    acc = lax.dot_general(                     # w @ x.T -> (L_pad, TM), MXU f32 acc
        w_ref[...], x,
        dimension_numbers=(((1,), (1,)), ((), ())),
        preferred_element_type=jnp.float32)
    o_ref[...] = acc + b_ref[...]              # bias broadcast along lanes (M axis)


@functools.partial(
    jax.jit, static_argnames=("in_channels", "tokenH", "tokenW", "tm"))
def linear_classifier_forward(embeddings, weight, bias, *,
                              in_channels, tokenH, tokenW, tm=None):
    """Pallas forward pass matching the PyTorch LinearClassifier.

    Args:
      embeddings: (B, tokenH * tokenW * in_channels), f32 (or bf16 from producer).
      weight:     (num_labels, in_channels)  (Conv2d 1x1 weight, squeezed).
      bias:       (num_labels,).
    Returns:
      (B, num_labels, tokenH, tokenW) float32 -- NCHW, same as torch Conv2d.
    """
    B = embeddings.shape[0]
    C = in_channels
    L = weight.shape[0]
    H, W = tokenH, tokenW
    M = B * H * W

    vmem_cap = _vmem_cap_bytes()
    if tm is None:
        # Larger tiles on 128 MiB-VMEM parts (v5e/v6e); conservative on v7x (64 MiB).
        tm = 1024 if vmem_cap >= (96 << 20) else 512
    TM = min(_round_up(tm, 128), _round_up(M, 128))
    grid_m = pl.cdiv(M, TM)          # ragged last block handled by boundary masking

    # Sublane-only padding of the label axis (lanes stay the dense M axis).
    L_pad = _round_up(L, 8)
    # TODO(synk): for very large num_labels (10k+), add an N grid axis over L.

    # (B, H*W*C) is contiguous as (B, H, W, C); flatten straight to (M, C).
    # No pad, no dtype copy of the activation stream.
    x = embeddings.reshape(M, C)
    # TODO(synk): if in_channels is small and not a multiple of 128 in a real
    # deployment, consider zero-padding C to 128 to keep x/w loads lane-dense.

    w = weight.astype(jnp.bfloat16)                  # tiny; cast cost negligible
    b = bias.astype(jnp.float32)
    if L_pad != L:
        w = jnp.pad(w, ((0, L_pad - L), (0, 0)))
        b = jnp.pad(b, ((0, L_pad - L),))
    b = b.reshape(L_pad, 1)

    # Scoped-VMEM budget: double-buffered x/out tiles + resident w/bias + headroom,
    # capped relative to this chip's physical VMEM.
    x_bytes = jnp.dtype(x.dtype).itemsize
    tile_bytes = (2 * TM * C * x_bytes       # x tiles (double-buffered)
                  + 2 * L_pad * C * 2        # w (bf16)
                  + 2 * L_pad * 1 * 4        # bias (f32)
                  + 2 * L_pad * TM * 4)      # out tiles (f32, double-buffered)
    vmem_limit = int(min(max(4 * tile_bytes, 16 << 20), 0.6 * vmem_cap))

    out_lm = pl.pallas_call(
        _linear_classifier_kernel,
        out_shape=jax.ShapeDtypeStruct((L_pad, M), jnp.float32),
        grid=(grid_m,),
        in_specs=[
            pl.BlockSpec((TM, C), lambda i: (i, 0)),
            # TODO(synk): on v7x with large C*L, single-buffer these grid-invariant
            # operands (pipeline_mode=pl.Buffered(1)) to free VMEM headroom.
            pl.BlockSpec((L_pad, C), lambda i: (0, 0)),
            pl.BlockSpec((L_pad, 1), lambda i: (0, 0)),
        ],
        out_specs=pl.BlockSpec((L_pad, TM), lambda i: (0, i)),
        compiler_params=pltpu.CompilerParams(
            # TODO(synk): on v7x, verify both TensorCores engage; if not, switch
            # this axis to pltpu.CORE_PARALLEL.
            dimension_semantics=("parallel",),
            vmem_limit_bytes=vmem_limit,
        ),
    )(x, w, b)

    # (L_pad, M) -> (L, B, H, W) -> NCHW (B, L, H, W).  Only a leading-axis swap
    # (contiguous H*W-sized copies); no strided last-axis transpose.
    out = out_lm[:L].reshape(L, B, H, W)
    return jnp.transpose(out, (1, 0, 2, 3))


if __name__ == "__main__":
    # Small shapes consistent with the module's forward.  tokenH=7 makes
    # M = 2*7*16 = 224 so the last M block is ragged (exercises boundary
    # masking); num_labels=5 exercises the L -> 8 sublane padding.
    in_channels = 32
    tokenH, tokenW = 7, 16
    num_labels = 5
    batch = 2

    key = jax.random.PRNGKey(0)
    k_x, k_w, k_b = jax.random.split(key, 3)

    embeddings = jax.random.normal(
        k_x, (batch, tokenH * tokenW * in_channels), dtype=jnp.float32)
    # Synthetic Conv2d(1x1) parameters (torch.nn.Conv2d(C, L, (1,1)).weight squeezed).
    weight = jax.random.normal(k_w, (num_labels, in_channels), dtype=jnp.float32) * 0.05
    bias = jax.random.normal(k_b, (num_labels,), dtype=jnp.float32) * 0.05

    # Small tile so the demo exercises multiple grid steps (M = 224, TM = 128).
    out = linear_classifier_forward(
        embeddings, weight, bias,
        in_channels=in_channels, tokenH=tokenH, tokenW=tokenW, tm=128)
    out = jax.block_until_ready(out)

    assert out.shape == (batch, num_labels, tokenH, tokenW), out.shape

    x_nhwc = embeddings.reshape(batch, tokenH, tokenW, in_channels)

    # Reference 1 (tight): same bf16-quantized operands, f32 accumulate — catches
    # kernel/indexing/masking bugs independent of the bf16 cast.
    xq = x_nhwc.astype(jnp.bfloat16).astype(jnp.float32)
    wq = weight.astype(jnp.bfloat16).astype(jnp.float32)
    ref_q = jnp.einsum("bhwc,lc->blhw", xq, wq) + bias[None, :, None, None]
    assert jnp.allclose(out, ref_q, atol=1e-3, rtol=1e-3), "mismatch vs bf16 reference"

    # Reference 2 (loose): full-f32 torch-equivalent math — confirms semantics.
    ref_f32 = jnp.einsum("bhwc,lc->blhw", x_nhwc, weight) + bias[None, :, None, None]
    assert jnp.allclose(out, ref_f32, atol=3e-2, rtol=3e-2), "mismatch vs f32 reference"

    print("KERNEL_OK")
</pallas_src>

<mosaic_0001>
module attributes {stable_mosaic.version = 11 : i64} {
  func.func @_linear_classifier_kernel(%arg0: i32, %arg1: memref<128x32xf32, #tpu.memory_space<vmem>>, %arg2: memref<8x32xbf16, #tpu.memory_space<vmem>>, %arg3: memref<8x1xf32, #tpu.memory_space<vmem>>, %arg4: memref<8x128xf32, #tpu.memory_space<vmem>>) attributes {dimension_semantics = [#tpu.dimension_semantics<parallel>], iteration_bounds = array<i64: 2>, scalar_prefetch = 0 : i64, scratch_operands = 0 : i64, tpu.core_type = #tpu.core_type<tc>, window_params = [{transform_indices = @transform_0, window_bounds = array<i64: 128, 32>}, {pipeline_mode = #tpu.pipeline_mode<synchronous>, transform_indices = @transform_1, window_bounds = array<i64: 8, 32>}, {pipeline_mode = #tpu.pipeline_mode<synchronous>, transform_indices = @transform_2, window_bounds = array<i64: 8, 1>}, {transform_indices = @transform_3, window_bounds = array<i64: 8, 128>}]} {
    %c0 = arith.constant 0 : index
    %c0_0 = arith.constant 0 : index
    %0 = vector.load %arg1[%c0, %c0_0] : memref<128x32xf32, #tpu.memory_space<vmem>>, vector<128x32xf32>
    %1 = arith.truncf %0 : vector<128x32xf32> to vector<128x32xbf16>
    %c0_1 = arith.constant 0 : index
    %c0_2 = arith.constant 0 : index
    %2 = vector.load %arg2[%c0_1, %c0_2] : memref<8x32xbf16, #tpu.memory_space<vmem>>, vector<8x32xbf16>
    %cst = arith.constant dense<0.000000e+00> : vector<8x128xf32>
    %3 = tpu.matmul %2, %1, %cst {dimension_numbers = #tpu.dot_dimension_numbers<[1], [1], [0], [0], [0, 0, 1, 0], [], []>} : vector<8x32xbf16>, vector<128x32xbf16>, vector<8x128xf32> -> vector<8x128xf32>
    %c0_3 = arith.constant 0 : index
    %c0_4 = arith.constant 0 : index
    %4 = vector.load %arg3[%c0_3, %c0_4] : memref<8x1xf32, #tpu.memory_space<vmem>>, vector<8x1xf32>
    %5 = vector.broadcast %4 : vector<8x1xf32> to vector<8x128xf32>
    %6 = arith.addf %3, %5 : vector<8x128xf32>
    %c0_5 = arith.constant 0 : index
    %c0_6 = arith.constant 0 : index
    %7 = vector.load %arg4[%c0_5, %c0_6] : memref<8x128xf32, #tpu.memory_space<vmem>>, vector<8x128xf32>
    tpu.vector_store %arg4[%c0_5, %c0_6], %6 {strides = array<i32>} : memref<8x128xf32, #tpu.memory_space<vmem>>, vector<8x128xf32>,
    return
  }
  func.func @transform_0(%arg0: i32) -> (i32, i32) {
    %c0_i32 = arith.constant 0 : i32
    %c0_i32_0 = arith.constant 0 : i32
    return %arg0, %c0_i32 : i32, i32
  }
  func.func @transform_1(%arg0: i32) -> (i32, i32) {
    %c0_i32 = arith.constant 0 : i32
    %c0_i32_0 = arith.constant 0 : i32
    %c0_i32_1 = arith.constant 0 : i32
    return %c0_i32, %c0_i32_0 : i32, i32
  }
  func.func @transform_2(%arg0: i32) -> (i32, i32) {
    %c0_i32 = arith.constant 0 : i32
    %c0_i32_0 = arith.constant 0 : i32
    %c0_i32_1 = arith.constant 0 : i32
    return %c0_i32, %c0_i32_0 : i32, i32
  }
  func.func @transform_3(%arg0: i32) -> (i32, i32) {
    %c0_i32 = arith.constant 0 : i32
    %c0_i32_0 = arith.constant 0 : i32
    return %c0_i32, %arg0 : i32, i32
  }
}

</mosaic_0001>

<llo_original>
// kernel: linear_classifier_forward.1
$region0: #{linear_classifier_forward.1}
  #allocation0 [shape = 'u32[]', space=smem, size = 0x4, offset = 0x4, fixed_abs, tag = 'smem constant byte address 0x4 - core index']
  #allocation1 [shape = 'u32[144,128]{1,0:T(1,128)}', space=vmem, size = 0x12000, scoped, tag = 'internal scratch']
  %s0 = inlined_call_operand.vmem [shape: f32[224,32], index: 0, kind: input, shape index: {}]
  %s1 = inlined_call_operand.vmem [shape: bf16[8,32], index: 1, kind: input, shape index: {}]
  %s2 = inlined_call_operand.vmem [shape: f32[8,1], index: 2, kind: input, shape index: {}]
  %s3 = inlined_call_operand.vmem [shape: f32[8,224], index: 3, kind: output, shape index: {}]
  %s4 = sld [smem:[#allocation0]]
  $region45: #{linear_classifier_forward.1} parent=0
    _
  %s6 = ssub.s32 1, %s4
  %s7 = scalar_select 0, %s6, %s4
  loop: start=0, step=1, limit=4
  $region2: #{linear_classifier_forward.1} parent=0 // loop_pre_header
    _
  $region3: #{linear_classifier_forward.1} parent=0 // loop_header
    %s9 = sphi 0, %s13
    %p10 = scmp.ge.s32.totalorder %s9, 4
    %s19 = sphi 0, %s21
    %s22 = sphi 0, %s19
    %s23 = sphi 0, %s22
    %s39 = sphi 0, %s23
    %s43 = sphi 0, %s43
    %s45 = sphi 0, %s43
    %s46 = sphi 0, %s45
    %s60 = sphi 0, %s46
    %s64 = sphi 0, %s64
    %s66 = sphi 0, %s64
    %s67 = sphi 0, %s66
    %s81 = sphi 0, %s67
    %s87 = sphi 0, %s89
    %s90 = sphi 0, %s87
    %s91 = sphi 0, %s90
    %s107 = sphi 0, %s91
  $region4: #{linear_classifier_forward.1} parent=0 // loop_header_branch
    %12 = sbr.rel (%p10) target = $region8
  $region5: #{linear_classifier_forward.1} parent=0 // loop_body
    %s14 = ssub.s32 %s9, 1
    %s15 = ssub.s32 %s9, 2
    %s16 = sadd.s32 %s9, 1
    %s17 = ssub.s32 %s9, %s16
    %p18 = scmp.eq.s32.totalorder %s17, 0
    %s20 = sadd.s32 %s19, 1
    %s21 = scalar_select %p18, %s19, %s20
    %p24 = pneg %p18
    %p25 = scmp.eq.s32.totalorder %s9, 1
    %p26 = por %p24, %p25
    %p27 = scmp.ne.s32.totalorder %s19, %s22
    %p28 = scmp.eq.s32.totalorder %s9, 0
    %p29 = por %p27, %p28
    %p30 = scmp.ne.s32.totalorder %s19, %s22
    %p31 = scmp.eq.s32.totalorder %s14, 1
    %p32 = por %p30, %p31
    %p33 = scmp.ne.s32.totalorder %s22, %s23
    %p34 = scmp.eq.s32.totalorder %s14, 0
    %p35 = por %p33, %p34
    %p36 = scmp.ne.s32.totalorder %s22, %s23
    %p37 = scmp.eq.s32.totalorder %s15, 1
    %p38 = por %p36, %p37
    %p40 = scmp.ne.s32.totalorder %s23, %s39
    %p41 = scmp.eq.s32.totalorder %s15, 0
    %p42 = por %p40, %p41
    %s44 = sadd.s32 %s43, 1
    %p47 = scmp.eq.s32.totalorder %s9, 1
    %p48 = scmp.ne.s32.totalorder %s43, %s45
    %p49 = scmp.eq.s32.totalorder %s9, 0
    %p50 = por %p48, %p49
    %p51 = scmp.ne.s32.totalorder %s43, %s45
    %p52 = scmp.eq.s32.totalorder %s14, 1
    %p53 = por %p51, %p52
    %p54 = scmp.ne.s32.totalorder %s45, %s46
    %p55 = scmp.eq.s32.totalorder %s14, 0
    %p56 = por %p54, %p55
    %p57 = scmp.ne.s32.totalorder %s45, %s46
    %p58 = scmp.eq.s32.totalorder %s15, 1
    %p59 = por %p57, %p58
    %p61 = scmp.ne.s32.totalorder %s46, %s60
    %p62 = scmp.eq.s32.totalorder %s15, 0
    %p63 = por %p61, %p62
    %s65 = sadd.s32 %s64, 1
    %p68 = scmp.eq.s32.totalorder %s9, 1
    %p69 = scmp.ne.s32.totalorder %s64, %s66
    %p70 = scmp.eq.s32.totalorder %s9, 0
    %p71 = por %p69, %p70
    %p72 = scmp.ne.s32.totalorder %s64, %s66
    %p73 = scmp.eq.s32.totalorder %s14, 1
    %p74 = por %p72, %p73
    %p75 = scmp.ne.s32.totalorder %s66, %s67
    %p76 = scmp.eq.s32.totalorder %s14, 0
    %p77 = por %p75, %p76
    %p78 = scmp.ne.s32.totalorder %s66, %s67
    %p79 = scmp.eq.s32.totalorder %s15, 1
    %p80 = por %p78, %p79
    %p82 = scmp.ne.s32.totalorder %s67, %s81
    %p83 = scmp.eq.s32.totalorder %s15, 0
    %p84 = por %p82, %p83
    %s85 = ssub.s32 %s9, %s16
    %p86 = scmp.eq.s32.totalorder %s85, 0
    %s88 = sadd.s32 %s87, 1
    %s89 = scalar_select %p86, %s87, %s88
    %p92 = pneg %p86
    %p93 = scmp.eq.s32.totalorder %s9, 1
    %p94 = por %p92, %p93
    %p95 = scmp.ne.s32.totalorder %s87, %s90
    %p96 = scmp.eq.s32.totalorder %s9, 0
    %p97 = por %p95, %p96
    %p98 = scmp.ne.s32.totalorder %s87, %s90
    %p99 = scmp.eq.s32.totalorder %s14, 1
    %p100 = por %p98, %p99
    %p101 = scmp.ne.s32.totalorder %s90, %s91
    %p102 = scmp.eq.s32.totalorder %s14, 0
    %p103 = por %p101, %p102
    %p104 = scmp.ne.s32.totalorder %s90, %s91
    %p105 = scmp.eq.s32.totalorder %s15, 1
    %p106 = por %p104, %p105
    %p108 = scmp.ne.s32.totalorder %s91, %s107
    %p109 = scmp.eq.s32.totalorder %s15, 0
    %p110 = por %p108, %p109
    %p111 = scmp.le.s32.totalorder 1, %s9
    %p112 = scmp.lt.s32.totalorder %s9, 3
    %p113 = pnand %p111, %p112
    %p114 = pneg %p113
    // Predicated region
    $region9: #{linear_classifier_forward.1} parent=5 // pred_check
      _
    $region10: #{linear_classifier_forward.1} parent=5 // pred_check_branch
      %116 = sbr.rel (%p113) target = $region12
    $region11: #{linear_classifier_forward.1} parent=5 // pred_region
      %s117 = ssub.s32 %s9, 1
      // Predicated region
      $region13: #{linear_classifier_forward.1} parent=11 // pred_check
        %p118 = pneg %p56
      $region14: #{linear_classifier_forward.1} parent=11 // pred_check_branch
        %120 = sbr.rel (%p118) target = $region16
      $region15: #{linear_classifier_forward.1} parent=11 // pred_region
        _
      $region16: #{linear_classifier_forward.1} parent=11 // pred_fallthru
        _
      // Predicated region
      $region17: #{linear_classifier_forward.1} parent=11 // pred_check
        %p121 = pneg %p77
      $region18: #{linear_classifier_forward.1} parent=11 // pred_check_branch
        %123 = sbr.rel (%p121) target = $region20
      $region19: #{linear_classifier_forward.1} parent=11 // pred_region
        _
      $region20: #{linear_classifier_forward.1} parent=11 // pred_fallthru
        _
    $region12: #{linear_classifier_forward.1} parent=5 // pred_fallthru
      _
    %p124 = scmp.lt.s32.totalorder %s9, 2
    // Predicated region
    $region21: #{linear_classifier_forward.1} parent=5 // pred_check
      %p125 = pneg %p124
    $region22: #{linear_classifier_forward.1} parent=5 // pred_check_branch
      %127 = sbr.rel (%p125) target = $region24
    $region23: #{linear_classifier_forward.1} parent=5 // pred_region
      // Predicated region
      $region25: #{linear_classifier_forward.1} parent=23 // pred_check
        %p128 = pneg %p29
      $region26: #{linear_classifier_forward.1} parent=23 // pred_check_branch
        %130 = sbr.rel (%p128) target = $region28
      $region27: #{linear_classifier_forward.1} parent=23 // pred_region
        %s131 = smul.u32 16, %s9
        %s132 = ssub.s32 28, %s131
        %p133 = scmp.lt.s32.totalorder %s132, 16
        %s134 = scalar_select %p133, %s132, 16
        %s135 = smul.u32 128, %s134
        %p136 = scmp.lt.s32.totalorder %s131, 27
        %s137 = scalar_select %p136, %s131, 27
        %s138 = smul.addr %s137, 8
        %s139 = scalar_lea.vmem %s0, %s138
        %s140 = smul.u32 16, %s9
        %s141 = ssub.s32 28, %s140
        %p142 = scmp.lt.s32.totalorder %s141, 16
        %s143 = scalar_select %p142, %s141, 16
        %s144 = smul.u32 128, %s143
      $region28: #{linear_classifier_forward.1} parent=23 // pred_fallthru
        _
    $region24: #{linear_classifier_forward.1} parent=5 // pred_fallthru
      _
    %p145 = scmp.le.s32.totalorder 1, %s9
    %p146 = scmp.lt.s32.totalorder %s9, 3
    %p147 = pnand %p145, %p146
    %p148 = pneg %p147
    // Predicated region
    $region29: #{linear_classifier_forward.1} parent=5 // pred_check
      _
    $region30: #{linear_classifier_forward.1} parent=5 // pred_check_branch
      %150 = sbr.rel (%p147) target = $region32
    $region31: #{linear_classifier_forward.1} parent=5 // pred_region
      %s151 = ssub.s32 %s9, 1
      %s152 = smul.u32 16, %s14
      %s153 = ssub.s32 28, %s152
      %p154 = scmp.lt.s32.totalorder %s153, 16
      %s155 = scalar_select %p154, %s153, 16
      %s156 = smul.u32 128, %s155
      %p157 = scmp.lt.s32.totalorder %s152, 27
      %s158 = scalar_select %p157, %s152, 27
      %s159 = smul.addr %s158, 8
      %s160 = scalar_lea.vmem %s0, %s159
      %p161 = pneg %p35
      %p162 = pneg %p32
      %p163 = pneg %p56
      %p164 = pneg %p53
      %p165 = pneg %p77
      %p166 = pneg %p74
      %p167 = pneg %p103
      %p168 = pneg %p100
      %p169 = scmp.lt.s32.totalorder %s14, 1
      %s170 = scalar_select %p169, %s14, 1
      %s171 = smul.addr %s170, 8
      %s172 = scalar_lea.vmem %s3, %s171
      %s173 = smul.u32 16, %s14
      %s174 = ssub.s32 28, %s173
      %p175 = scmp.lt.s32.totalorder %s174, 16
      %s176 = scalar_select %p175, %s174, 16
      %s177 = smul.u32 128, %s176
      %p178 = scmp.lt.s32.totalorder %s173, 27
      %s179 = scalar_select %p178, %s173, 27
      %s180 = smul.addr %s179, 8
      %s181 = scalar_lea.vmem %s0, %s180
      %s182 = smul.u32 16, %s14
      %s183 = ssub.s32 28, %s182
      %p184 = scmp.lt.s32.totalorder %s183, 16
      %s185 = scalar_select %p184, %s183, 16
      %s186 = smul.u32 128, %s185
      %p187 = scmp.lt.s32.totalorder %s14, 1
      %s188 = scalar_select %p187, %s14, 1
      %s189 = smul.addr %s188, 8
      %s190 = scalar_lea.vmem %s3, %s189
      %v192 = vld [vmem:[%s181] sm:$0xff]
      %v193 = vld [vmem:[%s181 + $0x8] sm:$0xff]
      %v194 = vld [vmem:[%s181 + $0x10] sm:$0xff]
      %v195 = vld [vmem:[%s181 + $0x18] sm:$0xff]
      %v196 = vld [vmem:[%s181 + $0x20] sm:$0xff]
      %v197 = vld [vmem:[%s181 + $0x28] sm:$0xff]
      %v198 = vld [vmem:[%s181 + $0x30] sm:$0xff]
      %v199 = vld [vmem:[%s181 + $0x38] sm:$0xff]
      %v200 = vld [vmem:[%s181 + $0x40] sm:$0xff]
      %v201 = vld [vmem:[%s181 + $0x48] sm:$0xff]
      %v202 = vld [vmem:[%s181 + $0x50] sm:$0xff]
      %v203 = vld [vmem:[%s181 + $0x58] sm:$0xff]
      %v204 = vld [vmem:[%s181 + $0x60] sm:$0xff]
      %v205 = vld [vmem:[%s181 + $0x68] sm:$0xff]
      %v206 = vld [vmem:[%s181 + $0x70] sm:$0xff]
      %v207 = vld [vmem:[%s181 + $0x78] sm:$0xff]
      %v208 = vpack.c.bf16 %v193, %v192
      %v209 = vpack.c.bf16 %v195, %v194
      %v210 = vpack.c.bf16 %v197, %v196
      %v211 = vpack.c.bf16 %v199, %v198
      %v212 = vpack.c.bf16 %v201, %v200
      %v213 = vpack.c.bf16 %v203, %v202
      %v214 = vpack.c.bf16 %v205, %v204
      %v215 = vpack.c.bf16 %v207, %v206
      %v216 = vld [vmem:[%s1] sm:$0xf]
      %v217 = vld [vmem:[%s2] sm:$0xff]
      %219 = vset.pattern.permute.xlu0 0
      %220 = vperm.xlu0 %219, %v217
      %v221 = vpop.permute.xlu0 %220
      %vm223 = vcmask 261120
      %v225 = vsel %vm223, %v216, 0
      %v228 = vsel %vm223, %v208, 0
      %v231 = vsel %vm223, %v209, 0
      %v234 = vsel %vm223, %v210, 0
      %v237 = vsel %vm223, %v211, 0
      %v240 = vsel %vm223, %v212, 0
      %v243 = vsel %vm223, %v213, 0
      %v246 = vsel %vm223, %v214, 0
      %v249 = vsel %vm223, %v215, 0
      %251 = vmatprep.subr.bf16.mxu0 0
      %252 = vmatpush1.bf16.xpose.msra.mxu0 %v228
      %253 = vmatprep.subr.bf16.mxu0 0
      %254 = vmatpush1.bf16.xpose.msra.mxu0 %v231
      %255 = vmatprep.subr.bf16.mxu0 0
      %256 = vmatpush1.bf16.xpose.msra.mxu0 %v234
      %257 = vmatprep.subr.bf16.mxu0 0
      %258 = vmatpush1.bf16.xpose.msra.mxu0 %v237
      %259 = vmatprep.subr.bf16.mxu0 0
      %260 = vmatpush1.bf16.xpose.msra.mxu0 %v240
      %261 = vmatprep.subr.bf16.mxu0 0
      %262 = vmatpush1.bf16.xpose.msra.mxu0 %v243
      %263 = vmatprep.subr.bf16.mxu0 0
      %264 = vmatpush1.bf16.xpose.msra.mxu0 %v246
      %265 = vmatprep.subr.bf16.mxu0 0
      %266 = vmatpush1.bf16.xpose.msra.mxu0 %v249
      %267 = vmatprep.subr.bf16.mxu0 0
      %268 = vmatpush1.bf16.xpose.msra.mxu0 0
      %269 = vmatprep.subr.bf16.mxu0 0
      %270 = vmatpush1.bf16.xpose.msra.mxu0 0
      %271 = vmatprep.subr.bf16.mxu0 0
      %272 = vmatpush1.bf16.xpose.msra.mxu0 0
      %273 = vmatprep.subr.bf16.mxu0 0
      %274 = vmatpush1.bf16.xpose.msra.mxu0 0
      %275 = vmatprep.subr.bf16.mxu0 0
      %276 = vmatpush1.bf16.xpose.msra.mxu0 0
      %277 = vmatprep.subr.bf16.mxu0 0
      %278 = vmatpush1.bf16.xpose.msra.mxu0 0
      %279 = vmatprep.subr.bf16.mxu0 0
      %280 = vmatpush1.bf16.xpose.msra.mxu0 0
      %281 = vmatprep.subr.bf16.mxu0 0
      %282 = vmatpush1.bf16.xpose.msra.mxu0 0
      %283 = vmatprep.mubr.bf16.mxu0 0
      %284 = vmatmul.mubr.bf16.gmra.mrb[0].mxu0 %v225
      %v285 = vpop.f32.mrb[0].mxu0
      %v286 = vadd.f32 %v221, %v285
      %v287 = vpop.f32.mrb[0].mxu0
      %v288 = vpop.f32.mrb[0].mxu0
      %v289 = vpop.f32.mrb[0].mxu0
      %290 = vdwg.mxu0
      %291 = vst [vmem:[%s190] sm:$0xff] %v286
      %p292 = scmp.lt.s32.totalorder %s14, 1
      %s293 = scalar_select %p292, %s14, 1
      %s294 = smul.addr %s293, 8
      %s295 = scalar_lea.vmem %s3, %s294
      // Predicated region
      $region33: #{linear_classifier_forward.1} parent=31 // pred_check
        %p296 = pneg %p100
      $region34: #{linear_classifier_forward.1} parent=31 // pred_check_branch
        %298 = sbr.rel (%p296) target = $region36
      $region35: #{linear_classifier_forward.1} parent=31 // pred_region
        _
      $region36: #{linear_classifier_forward.1} parent=31 // pred_fallthru
        _
    $region32: #{linear_classifier_forward.1} parent=5 // pred_fallthru
      _
    %p299 = scmp.le.s32.totalorder 2, %s9
    // Predicated region
    $region37: #{linear_classifier_forward.1} parent=5 // pred_check
      %p300 = pneg %p299
    $region38: #{linear_classifier_forward.1} parent=5 // pred_check_branch
      %302 = sbr.rel (%p300) target = $region40
    $region39: #{linear_classifier_forward.1} parent=5 // pred_region
      %s303 = ssub.s32 %s9, 2
      // Predicated region
      $region41: #{linear_classifier_forward.1} parent=39 // pred_check
        %p304 = pneg %p106
      $region42: #{linear_classifier_forward.1} parent=39 // pred_check_branch
        %306 = sbr.rel (%p304) target = $region44
      $region43: #{linear_classifier_forward.1} parent=39 // pred_region
        %p307 = scmp.lt.s32.totalorder %s15, 1
        %s308 = scalar_select %p307, %s15, 1
        %s309 = smul.addr %s308, 8
        %s310 = scalar_lea.vmem %s3, %s309
      $region44: #{linear_classifier_forward.1} parent=39 // pred_fallthru
        _
    $region40: #{linear_classifier_forward.1} parent=5 // pred_fallthru
      _
  $region6: #{linear_classifier_forward.1} parent=0 // loop_footer
    %s13 = sadd.s32 1, %s9
  $region7: #{linear_classifier_forward.1} parent=0 // loop_footer_branch
    %8 = sbr.rel target = $region3
  $region8: #{linear_classifier_forward.1} parent=0 // loop_exit
    _

</llo_original>
